<compile_context>
chip_gen: v6e
topology: v6e:2x2x1
jax: 0.10.0
libtpu: 0.0.40
codegen_flags: <defaults>
</compile_context>

<pallas_src>
import jax
import jax.numpy as jnp
from jax.experimental import pallas as pl
from jax.experimental.pallas import tpu as pltpu


def _round_up(x, m):
    return (x + m - 1) // m * m


# ----------------------------------------------------------------------------
# Kernel: one grid step = one batch tile through all three (fused) encoders.
#   h1 = relu(broadcast-mul-add over the 3 scalar inputs)      [VPU]
#   h2 = relu(h1 @ W2f + b2f)                                  [MXU, 96x96]
#   y  =      h2 @ W3f + b3f   (columns already interleaved)   [MXU, 96x18]
# ----------------------------------------------------------------------------
def _fused_kernel(snr_ref, ds_ref, dop_ref,
                  w1_ref, b1_ref, w2_ref, b2_ref, w3_ref, b3_ref, o_ref):
    # Layer 1 on the VPU: fan_in=1 per encoder -> broadcast multiply-add.
    # w1_ref rows have exact zeros off their own block, so summing the three
    # rank-1 contributions equals the block-diagonal apply (no cross-leakage).
    h = (snr_ref[...] * w1_ref[0:1, :]
         + ds_ref[...] * w1_ref[1:2, :]
         + dop_ref[...] * w1_ref[2:3, :]
         + b1_ref[...])
    h = jnp.maximum(h, 0.0)
    h = jnp.dot(h, w2_ref[...], preferred_element_type=jnp.float32) + b2_ref[...]
    h = jnp.maximum(h, 0.0)
    y = jnp.dot(h, w3_ref[...], preferred_element_type=jnp.float32) + b3_ref[...]
    o_ref[...] = y.astype(o_ref.dtype)


def channel_adapter_forward(snr, delay_spread, doppler_shift, fused_params,
                            *, block_b=512):
    """Pallas forward pass.

    Args:
      snr, delay_spread, doppler_shift: (B, 1) float32 arrays.
      fused_params: dict from `fuse_params` with block-diagonal fused weights:
        w1:(3, 3*h1) b1:(1, 3*h1) w2:(3*h1, 3*h2) b2:(1, 3*h2)
        w3:(3*h2, 3*h3) b3:(1, 3*h3)   (w3/b3 columns pre-permuted)

    Returns:
      (B, h3//2, 6) float32 (== (B, 3, 6) for h3 == 6), matching PyTorch.
    """
    B = snr.shape[0]
    w1, b1 = fused_params["w1"], fused_params["b1"]
    w2, b2 = fused_params["w2"], fused_params["b2"]
    w3, b3 = fused_params["w3"], fused_params["b3"]
    H1, H2, H3 = w1.shape[1], w2.shape[1], w3.shape[1]   # 3*h1, 3*h2, 3*h3
    h3 = H3 // 3

    # Batch tiling: multiple of 8 sublanes; pad B so the grid divides evenly.
    tb = min(block_b, _round_up(B, 8))
    b_pad = _round_up(B, tb)
    if b_pad != B:
        pad = ((0, b_pad - B), (0, 0))
        snr = jnp.pad(snr, pad)
        delay_spread = jnp.pad(delay_spread, pad)
        doppler_shift = jnp.pad(doppler_shift, pad)

    out = pl.pallas_call(
        _fused_kernel,
        out_shape=jax.ShapeDtypeStruct((b_pad, H3), jnp.float32),
        grid_spec=pltpu.PrefetchScalarGridSpec(
            num_scalar_prefetch=0,
            grid=(b_pad // tb,),
            in_specs=[
                pl.BlockSpec((tb, 1), lambda i: (i, 0)),      # snr
                pl.BlockSpec((tb, 1), lambda i: (i, 0)),      # delay spread
                pl.BlockSpec((tb, 1), lambda i: (i, 0)),      # doppler
                pl.BlockSpec((3, H1), lambda i: (0, 0)),      # W1 (fused, resident)
                pl.BlockSpec((1, H1), lambda i: (0, 0)),      # b1
                pl.BlockSpec((H1, H2), lambda i: (0, 0)),     # W2 (block-diag)
                pl.BlockSpec((1, H2), lambda i: (0, 0)),      # b2
                pl.BlockSpec((H2, H3), lambda i: (0, 0)),     # W3 (block-diag, permuted)
                pl.BlockSpec((1, H3), lambda i: (0, 0)),      # b3 (permuted)
            ],
            out_specs=pl.BlockSpec((tb, H3), lambda i: (i, 0)),
        ),
        compiler_params=pltpu.CompilerParams(
            dimension_semantics=("parallel",)),
    )(snr, delay_spread, doppler_shift, w1, b1, w2, b2, w3, b3)   # (b_pad, 3*h3)

    # Columns already interleaved -> metadata-only reshape.
    return out[:B].reshape(B, h3 // 2, 6)


# ----------------------------------------------------------------------------
# Parameter init (PyTorch-Linear-style) + one-time fusion into block-diagonal
# weights with the output permutation folded into W3/b3.
# ----------------------------------------------------------------------------
def init_params(key, hidden_sizes=(32, 32, 6)):
    h1, h2, h3 = hidden_sizes
    dims = [(1, h1), (h1, h2), (h2, h3)]
    keys = jax.random.split(key, 3 * 3 * 2)
    ws, bs = [[], [], []], [[], [], []]
    k = 0
    for _enc in range(3):                     # snr, ds, dop
        for layer, (fan_in, fan_out) in enumerate(dims):
            bound = 1.0 / jnp.sqrt(jnp.float32(fan_in))
            w = jax.random.uniform(keys[k], (fan_in, fan_out), jnp.float32,
                                   -bound, bound); k += 1
            b = jax.random.uniform(keys[k], (1, fan_out), jnp.float32,
                                   -bound, bound); k += 1
            ws[layer].append(w)
            bs[layer].append(b)
    return {
        "w1": jnp.stack(ws[0]), "b1": jnp.stack(bs[0]),
        "w2": jnp.stack(ws[1]), "b2": jnp.stack(bs[1]),
        "w3": jnp.stack(ws[2]), "b3": jnp.stack(bs[2]),
    }


def fuse_params(params):
    """Build block-diagonal fused weights; fold the reshape+concat epilogue
    into the columns of W3/b3.  Done once at init — free at run time."""
    w1, b1 = params["w1"], params["b1"]   # (3, 1,  h1), (3, 1, h1)
    w2, b2 = params["w2"], params["b2"]   # (3, h1, h2), (3, 1, h2)
    w3, b3 = params["w3"], params["b3"]   # (3, h2, h3), (3, 1, h3)
    h3 = w3.shape[2]
    assert h3 % 2 == 0, "last hidden size must be even (reshape to (B, -1, 2))"

    def block_diag(ws):
        din, dout = ws.shape[1], ws.shape[2]
        out = jnp.zeros((3 * din, 3 * dout), ws.dtype)
        for e in range(3):
            out = out.at[e * din:(e + 1) * din, e * dout:(e + 1) * dout].set(ws[e])
        return out

    def cat_bias(bb):
        return jnp.concatenate([bb[e] for e in range(3)], axis=1)   # (1, 3*h)

    w1_f, b1_f = block_diag(w1), cat_bias(b1)       # (3, 3*h1), (1, 3*h1)
    w2_f, b2_f = block_diag(w2), cat_bias(b2)       # (3*h1, 3*h2), (1, 3*h2)
    w3_f, b3_f = block_diag(w3), cat_bias(b3)       # (3*h2, 3*h3), (1, 3*h3)

    # Column permutation so the flat (B, 3*h3) output matches the row-major
    # flattening of torch.cat([snr.view(B,-1,2), ds..., dop...], dim=2).
    perm = jnp.array([e * h3 + 2 * r + c
                      for r in range(h3 // 2) for e in range(3) for c in range(2)],
                     dtype=jnp.int32)
    w3_f = w3_f[:, perm]
    b3_f = b3_f[:, perm]
    return {"w1": w1_f, "b1": b1_f, "w2": w2_f, "b2": b2_f,
            "w3": w3_f, "b3": b3_f}


def _reference(snr, ds, dop, params):
    """Pure-JAX reference (unfused, mirrors the PyTorch module)."""
    def mlp(x, e):
        h = jnp.maximum(x @ params["w1"][e] + params["b1"][e], 0.0)
        h = jnp.maximum(h @ params["w2"][e] + params["b2"][e], 0.0)
        return h @ params["w3"][e] + params["b3"][e]
    B = snr.shape[0]
    embs = [mlp(t, e).reshape(B, -1, 2) for e, t in enumerate((snr, ds, dop))]
    return jnp.concatenate(embs, axis=2)


if __name__ == "__main__":
    key = jax.random.PRNGKey(0)
    kp, ks, kd, ko = jax.random.split(key, 4)

    hidden_sizes = (32, 32, 6)   # h3=6 is required for the (B, 3, 6) token
    params = init_params(kp, hidden_sizes)
    fused = fuse_params(params)

    B = 2
    snr = jax.random.normal(ks, (B, 1), jnp.float32)
    delay_spread = jax.random.normal(kd, (B, 1), jnp.float32)
    doppler_shift = jax.random.normal(ko, (B, 1), jnp.float32)

    out = channel_adapter_forward(snr, delay_spread, doppler_shift, fused)
    out = jax.block_until_ready(out)

    ref = _reference(snr, delay_spread, doppler_shift, params)
    assert out.shape == (B, 3, 6), out.shape
    assert jnp.allclose(out, ref, atol=1e-5, rtol=1e-5), \
        float(jnp.max(jnp.abs(out - ref)))

    print("KERNEL_OK")
</pallas_src>

<mosaic_0001>
module attributes {stable_mosaic.version = 11 : i64} {
  func.func @_fused_kernel(%arg0: i32, %arg1: memref<8x1xf32, #tpu.memory_space<vmem>>, %arg2: memref<8x1xf32, #tpu.memory_space<vmem>>, %arg3: memref<8x1xf32, #tpu.memory_space<vmem>>, %arg4: memref<3x96xf32, #tpu.memory_space<vmem>>, %arg5: memref<1x96xf32, #tpu.memory_space<vmem>>, %arg6: memref<96x96xf32, #tpu.memory_space<vmem>>, %arg7: memref<1x96xf32, #tpu.memory_space<vmem>>, %arg8: memref<96x18xf32, #tpu.memory_space<vmem>>, %arg9: memref<1x18xf32, #tpu.memory_space<vmem>>, %arg10: memref<8x18xf32, #tpu.memory_space<vmem>>) attributes {dimension_semantics = [#tpu.dimension_semantics<parallel>], iteration_bounds = array<i64: 1>, scalar_prefetch = 0 : i64, scratch_operands = 0 : i64, tpu.core_type = #tpu.core_type<tc>, window_params = [{transform_indices = @transform_0, window_bounds = array<i64: 8, 1>}, {transform_indices = @transform_1, window_bounds = array<i64: 8, 1>}, {transform_indices = @transform_2, window_bounds = array<i64: 8, 1>}, {pipeline_mode = #tpu.pipeline_mode<synchronous>, transform_indices = @transform_3, window_bounds = array<i64: 3, 96>}, {pipeline_mode = #tpu.pipeline_mode<synchronous>, transform_indices = @transform_4, window_bounds = array<i64: 1, 96>}, {pipeline_mode = #tpu.pipeline_mode<synchronous>, transform_indices = @transform_5, window_bounds = array<i64: 96, 96>}, {pipeline_mode = #tpu.pipeline_mode<synchronous>, transform_indices = @transform_6, window_bounds = array<i64: 1, 96>}, {pipeline_mode = #tpu.pipeline_mode<synchronous>, transform_indices = @transform_7, window_bounds = array<i64: 96, 18>}, {pipeline_mode = #tpu.pipeline_mode<synchronous>, transform_indices = @transform_8, window_bounds = array<i64: 1, 18>}, {transform_indices = @transform_9, window_bounds = array<i64: 8, 18>}]} {
    %c0 = arith.constant 0 : index
    %c0_0 = arith.constant 0 : index
    %0 = vector.load %arg1[%c0, %c0_0] : memref<8x1xf32, #tpu.memory_space<vmem>>, vector<8x1xf32>
    %c0_1 = arith.constant 0 : index
    %c0_2 = arith.constant 0 : index
    %1 = vector.load %arg4[%c0_1, %c0_2] : memref<3x96xf32, #tpu.memory_space<vmem>>, vector<1x96xf32>
    %2 = vector.broadcast %0 : vector<8x1xf32> to vector<8x96xf32>
    %3 = vector.broadcast %1 : vector<1x96xf32> to vector<8x96xf32>
    %4 = arith.mulf %2, %3 : vector<8x96xf32>
    %c0_3 = arith.constant 0 : index
    %c0_4 = arith.constant 0 : index
    %5 = vector.load %arg2[%c0_3, %c0_4] : memref<8x1xf32, #tpu.memory_space<vmem>>, vector<8x1xf32>
    %c1 = arith.constant 1 : index
    %c0_5 = arith.constant 0 : index
    %6 = vector.load %arg4[%c1, %c0_5] : memref<3x96xf32, #tpu.memory_space<vmem>>, vector<1x96xf32>
    %7 = vector.broadcast %5 : vector<8x1xf32> to vector<8x96xf32>
    %8 = vector.broadcast %6 : vector<1x96xf32> to vector<8x96xf32>
    %9 = arith.mulf %7, %8 : vector<8x96xf32>
    %10 = arith.addf %4, %9 : vector<8x96xf32>
    %c0_6 = arith.constant 0 : index
    %c0_7 = arith.constant 0 : index
    %11 = vector.load %arg3[%c0_6, %c0_7] : memref<8x1xf32, #tpu.memory_space<vmem>>, vector<8x1xf32>
    %c2 = arith.constant 2 : index
    %c0_8 = arith.constant 0 : index
    %12 = vector.load %arg4[%c2, %c0_8] : memref<3x96xf32, #tpu.memory_space<vmem>>, vector<1x96xf32>
    %13 = vector.broadcast %11 : vector<8x1xf32> to vector<8x96xf32>
    %14 = vector.broadcast %12 : vector<1x96xf32> to vector<8x96xf32>
    %15 = arith.mulf %13, %14 : vector<8x96xf32>
    %16 = arith.addf %10, %15 : vector<8x96xf32>
    %c0_9 = arith.constant 0 : index
    %c0_10 = arith.constant 0 : index
    %17 = vector.load %arg5[%c0_9, %c0_10] : memref<1x96xf32, #tpu.memory_space<vmem>>, vector<1x96xf32>
    %18 = vector.broadcast %17 : vector<1x96xf32> to vector<8x96xf32>
    %19 = arith.addf %16, %18 : vector<8x96xf32>
    %cst = arith.constant 0.000000e+00 : f32
    %20 = vector.broadcast %cst : f32 to vector<8x96xf32>
    %21 = arith.maximumf %19, %20 : vector<8x96xf32>
    %c0_11 = arith.constant 0 : index
    %c0_12 = arith.constant 0 : index
    %22 = vector.load %arg6[%c0_11, %c0_12] : memref<96x96xf32, #tpu.memory_space<vmem>>, vector<96x96xf32>
    %cst_13 = arith.constant dense<0.000000e+00> : vector<8x96xf32>
    %23 = tpu.matmul %21, %22, %cst_13 {dimension_numbers = #tpu.dot_dimension_numbers<[1], [0], [0], [1], [0, 0, 1, 1], [], []>} : vector<8x96xf32>, vector<96x96xf32>, vector<8x96xf32> -> vector<8x96xf32>
    %c0_14 = arith.constant 0 : index
    %c0_15 = arith.constant 0 : index
    %24 = vector.load %arg7[%c0_14, %c0_15] : memref<1x96xf32, #tpu.memory_space<vmem>>, vector<1x96xf32>
    %25 = vector.broadcast %24 : vector<1x96xf32> to vector<8x96xf32>
    %26 = arith.addf %23, %25 : vector<8x96xf32>
    %cst_16 = arith.constant 0.000000e+00 : f32
    %27 = vector.broadcast %cst_16 : f32 to vector<8x96xf32>
    %28 = arith.maximumf %26, %27 : vector<8x96xf32>
    %c0_17 = arith.constant 0 : index
    %c0_18 = arith.constant 0 : index
    %29 = vector.load %arg8[%c0_17, %c0_18] : memref<96x18xf32, #tpu.memory_space<vmem>>, vector<96x18xf32>
    %cst_19 = arith.constant dense<0.000000e+00> : vector<8x18xf32>
    %30 = tpu.matmul %28, %29, %cst_19 {dimension_numbers = #tpu.dot_dimension_numbers<[1], [0], [0], [1], [0, 0, 1, 1], [], []>} : vector<8x96xf32>, vector<96x18xf32>, vector<8x18xf32> -> vector<8x18xf32>
    %c0_20 = arith.constant 0 : index
    %c0_21 = arith.constant 0 : index
    %31 = vector.load %arg9[%c0_20, %c0_21] : memref<1x18xf32, #tpu.memory_space<vmem>>, vector<1x18xf32>
    %32 = vector.broadcast %31 : vector<1x18xf32> to vector<8x18xf32>
    %33 = arith.addf %30, %32 : vector<8x18xf32>
    %c0_22 = arith.constant 0 : index
    %c0_23 = arith.constant 0 : index
    %34 = vector.load %arg10[%c0_22, %c0_23] : memref<8x18xf32, #tpu.memory_space<vmem>>, vector<8x18xf32>
    tpu.vector_store %arg10[%c0_22, %c0_23], %33 {strides = array<i32>} : memref<8x18xf32, #tpu.memory_space<vmem>>, vector<8x18xf32>,
    return
  }
  func.func @transform_0(%arg0: i32) -> (i32, i32) {
    %c0_i32 = arith.constant 0 : i32
    %c0_i32_0 = arith.constant 0 : i32
    return %arg0, %c0_i32 : i32, i32
  }
  func.func @transform_1(%arg0: i32) -> (i32, i32) {
    %c0_i32 = arith.constant 0 : i32
    %c0_i32_0 = arith.constant 0 : i32
    return %arg0, %c0_i32 : i32, i32
  }
  func.func @transform_2(%arg0: i32) -> (i32, i32) {
    %c0_i32 = arith.constant 0 : i32
    %c0_i32_0 = arith.constant 0 : i32
    return %arg0, %c0_i32 : i32, i32
  }
  func.func @transform_3(%arg0: i32) -> (i32, i32) {
    %c0_i32 = arith.constant 0 : i32
    %c0_i32_0 = arith.constant 0 : i32
    %c0_i32_1 = arith.constant 0 : i32
    return %c0_i32, %c0_i32_0 : i32, i32
  }
  func.func @transform_4(%arg0: i32) -> (i32, i32) {
    %c0_i32 = arith.constant 0 : i32
    %c0_i32_0 = arith.constant 0 : i32
    %c0_i32_1 = arith.constant 0 : i32
    return %c0_i32, %c0_i32_0 : i32, i32
  }
  func.func @transform_5(%arg0: i32) -> (i32, i32) {
    %c0_i32 = arith.constant 0 : i32
    %c0_i32_0 = arith.constant 0 : i32
    %c0_i32_1 = arith.constant 0 : i32
    return %c0_i32, %c0_i32_0 : i32, i32
  }
  func.func @transform_6(%arg0: i32) -> (i32, i32) {
    %c0_i32 = arith.constant 0 : i32
    %c0_i32_0 = arith.constant 0 : i32
    %c0_i32_1 = arith.constant 0 : i32
    return %c0_i32, %c0_i32_0 : i32, i32
  }
  func.func @transform_7(%arg0: i32) -> (i32, i32) {
    %c0_i32 = arith.constant 0 : i32
    %c0_i32_0 = arith.constant 0 : i32
    %c0_i32_1 = arith.constant 0 : i32
    return %c0_i32, %c0_i32_0 : i32, i32
  }
  func.func @transform_8(%arg0: i32) -> (i32, i32) {
    %c0_i32 = arith.constant 0 : i32
    %c0_i32_0 = arith.constant 0 : i32
    %c0_i32_1 = arith.constant 0 : i32
    return %c0_i32, %c0_i32_0 : i32, i32
  }
  func.func @transform_9(%arg0: i32) -> (i32, i32) {
    %c0_i32 = arith.constant 0 : i32
    %c0_i32_0 = arith.constant 0 : i32
    return %arg0, %c0_i32 : i32, i32
  }
}

</mosaic_0001>

<llo_original>
// kernel: tpu_custom_call.1
$region0: #{tpu_custom_call.1}
  #allocation0 [shape = 'u32[]', space=smem, size = 0x4, offset = 0x4, fixed_abs, tag = 'smem constant byte address 0x4 - core index']
  #allocation1 [shape = 'u32[144,128]{1,0:T(1,128)}', space=vmem, size = 0x12000, scoped, tag = 'internal scratch']
  %s0 = inlined_call_operand.vmem [shape: f32[8,1], index: 0, kind: input, shape index: {}]
  %s1 = inlined_call_operand.vmem [shape: f32[8,1], index: 1, kind: input, shape index: {}]
  %s2 = inlined_call_operand.vmem [shape: f32[8,1], index: 2, kind: input, shape index: {}]
  %s3 = inlined_call_operand.vmem [shape: f32[3,96], index: 3, kind: input, shape index: {}]
  %s4 = inlined_call_operand.vmem [shape: f32[1,96], index: 4, kind: input, shape index: {}]
  %s5 = inlined_call_operand.vmem [shape: f32[96,96], index: 5, kind: input, shape index: {}]
  %s6 = inlined_call_operand.vmem [shape: f32[1,96], index: 6, kind: input, shape index: {}]
  %s7 = inlined_call_operand.vmem [shape: f32[96,18], index: 7, kind: input, shape index: {}]
  %s8 = inlined_call_operand.vmem [shape: f32[1,18], index: 8, kind: input, shape index: {}]
  %s9 = inlined_call_operand.hbm [shape: f32[8,18], index: 9, kind: output, shape index: {}]
  %s10 = sld [smem:[#allocation0]]
  $region46: #{tpu_custom_call.1} parent=0
    _
  %s12 = ssub.s32 1, %s10
  %s13 = scalar_select 0, %s12, %s10
  $region1: #{tpu_custom_call.1} parent=0
    #allocation2 [shape = 'u8[4096]{0}', space=vmem, size = 0x1000, scoped, tag = 'output window, operand 0, single buffered']
    #allocation3 [shape = 's32[1]{0}', space=sflag, size = 0x4, scoped, tag = 'scoped memory for tpu_custom_call.1']
    %14 = vsyncpa [#allocation3], 0
    // Predicated region
    $region2: #{tpu_custom_call.1} parent=1 // pred_check
      _
    $region3: #{tpu_custom_call.1} parent=1 // pred_check_branch
      %16 = sbr.rel (0) target = $region5
    $region4: #{tpu_custom_call.1} parent=1 // pred_region
      _
    $region5: #{tpu_custom_call.1} parent=1 // pred_fallthru
      _
    // Predicated region
    $region6: #{tpu_custom_call.1} parent=1 // pred_check
      _
    $region7: #{tpu_custom_call.1} parent=1 // pred_check_branch
      %18 = sbr.rel (0) target = $region9
    $region8: #{tpu_custom_call.1} parent=1 // pred_region
      _
    $region9: #{tpu_custom_call.1} parent=1 // pred_fallthru
      _
    // Predicated region
    $region10: #{tpu_custom_call.1} parent=1 // pred_check
      _
    $region11: #{tpu_custom_call.1} parent=1 // pred_check_branch
      %20 = sbr.rel (0) target = $region13
    $region12: #{tpu_custom_call.1} parent=1 // pred_region
      _
    $region13: #{tpu_custom_call.1} parent=1 // pred_fallthru
      _
    // Predicated region
    $region14: #{tpu_custom_call.1} parent=1 // pred_check
      _
    $region15: #{tpu_custom_call.1} parent=1 // pred_check_branch
      %22 = sbr.rel (0) target = $region17
    $region16: #{tpu_custom_call.1} parent=1 // pred_region
      _
    $region17: #{tpu_custom_call.1} parent=1 // pred_fallthru
      _
    // Predicated region
    $region18: #{tpu_custom_call.1} parent=1 // pred_check
      _
    $region19: #{tpu_custom_call.1} parent=1 // pred_check_branch
      %24 = sbr.rel (0) target = $region21
    $region20: #{tpu_custom_call.1} parent=1 // pred_region
      _
    $region21: #{tpu_custom_call.1} parent=1 // pred_fallthru
      _
    // Predicated region
    $region22: #{tpu_custom_call.1} parent=1 // pred_check
      _
    $region23: #{tpu_custom_call.1} parent=1 // pred_check_branch
      %26 = sbr.rel (0) target = $region25
    $region24: #{tpu_custom_call.1} parent=1 // pred_region
      _
    $region25: #{tpu_custom_call.1} parent=1 // pred_fallthru
      _
    // Predicated region
    $region26: #{tpu_custom_call.1} parent=1 // pred_check
      _
    $region27: #{tpu_custom_call.1} parent=1 // pred_check_branch
      %28 = sbr.rel (0) target = $region29
    $region28: #{tpu_custom_call.1} parent=1 // pred_region
      _
    $region29: #{tpu_custom_call.1} parent=1 // pred_fallthru
      _
    // Predicated region
    $region30: #{tpu_custom_call.1} parent=1 // pred_check
      _
    $region31: #{tpu_custom_call.1} parent=1 // pred_check_branch
      %30 = sbr.rel (0) target = $region33
    $region32: #{tpu_custom_call.1} parent=1 // pred_region
      _
    $region33: #{tpu_custom_call.1} parent=1 // pred_fallthru
      _
    // Predicated region
    $region34: #{tpu_custom_call.1} parent=1 // pred_check
      _
    $region35: #{tpu_custom_call.1} parent=1 // pred_check_branch
      %32 = sbr.rel (0) target = $region37
    $region36: #{tpu_custom_call.1} parent=1 // pred_region
      _
    $region37: #{tpu_custom_call.1} parent=1 // pred_fallthru
      _
    %v33 = vld [vmem:[%s0] sm:$0xff]
    %v34 = vld [vmem:[%s3] sm:$0x1]
    %36 = vset.pattern.permute.xlu0 0
    %37 = vperm.xlu0 %36, %v33
    %v38 = vpop.permute.xlu0 %37
    %v40 = vlaneseq
    %v41 = vshrl.u32 %v40, 7
    %v42 = vsub.s32 0, %v41
    %v43 = vrot.slane %v34, %v42
    %v44 = vmul.f32 %v38, %v43
    %v45 = vld [vmem:[%s1] sm:$0xff]
    %v46 = vld [vmem:[%s3 + $0x1] sm:$0x1]
    %48 = vset.pattern.permute.xlu0 0
    %49 = vperm.xlu0 %48, %v45
    %v50 = vpop.permute.xlu0 %49
    %v52 = vlaneseq
    %v53 = vshrl.u32 %v52, 7
    %v54 = vsub.s32 0, %v53
    %v55 = vrot.slane %v46, %v54
    %v56 = vmul.f32 %v50, %v55
    %v57 = vadd.f32 %v44, %v56
    %v58 = vld [vmem:[%s2] sm:$0xff]
    %v59 = vld [vmem:[%s3 + $0x2] sm:$0x1]
    %61 = vset.pattern.permute.xlu0 0
    %62 = vperm.xlu0 %61, %v58
    %v63 = vpop.permute.xlu0 %62
    %v65 = vlaneseq
    %v66 = vshrl.u32 %v65, 7
    %v67 = vsub.s32 0, %v66
    %v68 = vrot.slane %v59, %v67
    %v69 = vmul.f32 %v63, %v68
    %v70 = vadd.f32 %v57, %v69
    %v71 = vld [vmem:[%s4] sm:$0x1]
    %v73 = vlaneseq
    %v74 = vshrl.u32 %v73, 7
    %v75 = vsub.s32 0, %v74
    %v76 = vrot.slane %v71, %v75
    %v78 = vadd.f32 %v70, %v76
    %v79 = vmax.f32 %v78, 0.0
    %v80 = vld [vmem:[%s5] sm:$0xff]
    %v81 = vld [vmem:[%s5 + $0x8] sm:$0xff]
    %v82 = vld [vmem:[%s5 + $0x10] sm:$0xff]
    %v83 = vld [vmem:[%s5 + $0x18] sm:$0xff]
    %v84 = vld [vmem:[%s5 + $0x20] sm:$0xff]
    %v85 = vld [vmem:[%s5 + $0x28] sm:$0xff]
    %v86 = vld [vmem:[%s5 + $0x30] sm:$0xff]
    %v87 = vld [vmem:[%s5 + $0x38] sm:$0xff]
    %v88 = vld [vmem:[%s5 + $0x40] sm:$0xff]
    %v89 = vld [vmem:[%s5 + $0x48] sm:$0xff]
    %v90 = vld [vmem:[%s5 + $0x50] sm:$0xff]
    %v91 = vld [vmem:[%s5 + $0x58] sm:$0xff]
    %v92 = vld [vmem:[%s6] sm:$0x1]
    %v94 = vlaneseq
    %v95 = vshrl.u32 %v94, 7
    %v96 = vsub.s32 0, %v95
    %v97 = vrot.slane %v92, %v96
    %vm99 = vcmask 785408
    %v101 = vsel %vm99, %v79, 0
    %103 = vmatprep.subr.mxu0 0.0
    %104 = vmatpush1.msra.mxu0 0.0
    %105 = vmatprep.subr.mxu0 0.0
    %106 = vmatpush1.msra.mxu0 0.0
    %107 = vmatprep.subr.mxu0 0.0
    %108 = vmatpush1.msra.mxu0 0.0
    %109 = vmatprep.subr.mxu0 0.0
    %110 = vmatpush1.msra.mxu0 0.0
    %111 = vmatprep.subr.mxu0 0.0
    %112 = vmatpush1.msra.mxu0 %v91
    %113 = vmatprep.subr.mxu0 0.0
    %114 = vmatpush1.msra.mxu0 %v90
    %115 = vmatprep.subr.mxu0 0.0
    %116 = vmatpush1.msra.mxu0 %v89
    %117 = vmatprep.subr.mxu0 0.0
    %118 = vmatpush1.msra.mxu0 %v88
    %119 = vmatprep.subr.mxu0 0.0
    %120 = vmatpush1.msra.mxu0 %v87
    %121 = vmatprep.subr.mxu0 0.0
    %122 = vmatpush1.msra.mxu0 %v86
    %123 = vmatprep.subr.mxu0 0.0
    %124 = vmatpush1.msra.mxu0 %v85
    %125 = vmatprep.subr.mxu0 0.0
    %126 = vmatpush1.msra.mxu0 %v84
    %127 = vmatprep.subr.mxu0 0.0
    %128 = vmatpush1.msra.mxu0 %v83
    %129 = vmatprep.subr.mxu0 0.0
    %130 = vmatpush1.msra.mxu0 %v82
    %131 = vmatprep.subr.mxu0 0.0
    %132 = vmatpush1.msra.mxu0 %v81
    %133 = vmatprep.subr.mxu0 0.0
    %134 = vmatpush1.msra.mxu0 %v80
    %135 = vmatprep.subr.mxu0 0.0
    %136 = vmatpush2.msra.mxu0 0.0
    %137 = vmatprep.subr.mxu0 0.0
    %138 = vmatpush2.msra.mxu0 0.0
    %139 = vmatprep.subr.mxu0 0.0
    %140 = vmatpush2.msra.mxu0 0.0
    %141 = vmatprep.subr.mxu0 0.0
    %142 = vmatpush2.msra.mxu0 0.0
    %143 = vmatprep.subr.mxu0 0.0
    %144 = vmatpush2.msra.mxu0 0.0
    %145 = vmatprep.subr.mxu0 0.0
    %146 = vmatpush2.msra.mxu0 0.0
    %147 = vmatprep.subr.mxu0 0.0
    %148 = vmatpush2.msra.mxu0 0.0
    %149 = vmatprep.subr.mxu0 0.0
    %150 = vmatpush2.msra.mxu0 0.0
    %151 = vmatprep.subr.mxu0 0.0
    %152 = vmatpush2.msra.mxu0 0.0
    %153 = vmatprep.subr.mxu0 0.0
    %154 = vmatpush2.msra.mxu0 0.0
    %155 = vmatprep.subr.mxu0 0.0
    %156 = vmatpush2.msra.mxu0 0.0
    %157 = vmatprep.subr.mxu0 0.0
    %158 = vmatpush2.msra.mxu0 0.0
    %159 = vmatprep.subr.mxu0 0.0
    %160 = vmatpush2.msra.mxu0 0.0
    %161 = vmatprep.subr.mxu0 0.0
    %162 = vmatpush2.msra.mxu0 0.0
    %163 = vmatprep.subr.mxu0 0.0
    %164 = vmatpush2.msra.mxu0 0.0
    %165 = vmatprep.subr.mxu0 0.0
    %166 = vmatpush2.msra.mxu0 0.0
    %167 = vmatprep.mubr.f32.mxu0 0.0
    %168 = vmatmul.mubr.f32.gmra.mxu0 %v101
    %v169 = vpop.f32.mrf.mxu0
    %v170 = vadd.f32 %v97, %v169
    %v171 = vpop.f32.mrf.mxu0
    %172 = vdwg.mxu0
    %v173 = vmax.f32 %v170, 0.0
    %v174 = vld [vmem:[%s7] sm:$0xff]
    %v175 = vld [vmem:[%s7 + $0x8] sm:$0xff]
    %v176 = vld [vmem:[%s7 + $0x10] sm:$0xff]
    %v177 = vld [vmem:[%s7 + $0x18] sm:$0xff]
    %v178 = vld [vmem:[%s7 + $0x20] sm:$0xff]
    %v179 = vld [vmem:[%s7 + $0x28] sm:$0xff]
    %v180 = vld [vmem:[%s7 + $0x30] sm:$0xff]
    %v181 = vld [vmem:[%s7 + $0x38] sm:$0xff]
    %v182 = vld [vmem:[%s7 + $0x40] sm:$0xff]
    %v183 = vld [vmem:[%s7 + $0x48] sm:$0xff]
    %v184 = vld [vmem:[%s7 + $0x50] sm:$0xff]
    %v185 = vld [vmem:[%s7 + $0x58] sm:$0xff]
    %v186 = vld [vmem:[%s8] sm:$0x1]
    %v188 = vlaneseq
    %v189 = vshrl.u32 %v188, 7
    %v190 = vsub.s32 0, %v189
    %v191 = vrot.slane %v186, %v190
    %v194 = vsel %vm99, %v173, 0
    %196 = vmatprep.subr.mxu0 0.0
    %197 = vmatpush1.msra.mxu0 0.0
    %198 = vmatprep.subr.mxu0 0.0
    %199 = vmatpush1.msra.mxu0 0.0
    %200 = vmatprep.subr.mxu0 0.0
    %201 = vmatpush1.msra.mxu0 0.0
    %202 = vmatprep.subr.mxu0 0.0
    %203 = vmatpush1.msra.mxu0 0.0
    %204 = vmatprep.subr.mxu0 0.0
    %205 = vmatpush1.msra.mxu0 %v185
    %206 = vmatprep.subr.mxu0 0.0
    %207 = vmatpush1.msra.mxu0 %v184
    %208 = vmatprep.subr.mxu0 0.0
    %209 = vmatpush1.msra.mxu0 %v183
    %210 = vmatprep.subr.mxu0 0.0
    %211 = vmatpush1.msra.mxu0 %v182
    %212 = vmatprep.subr.mxu0 0.0
    %213 = vmatpush1.msra.mxu0 %v181
    %214 = vmatprep.subr.mxu0 0.0
    %215 = vmatpush1.msra.mxu0 %v180
    %216 = vmatprep.subr.mxu0 0.0
    %217 = vmatpush1.msra.mxu0 %v179
    %218 = vmatprep.subr.mxu0 0.0
    %219 = vmatpush1.msra.mxu0 %v178
    %220 = vmatprep.subr.mxu0 0.0
    %221 = vmatpush1.msra.mxu0 %v177
    %222 = vmatprep.subr.mxu0 0.0
    %223 = vmatpush1.msra.mxu0 %v176
    %224 = vmatprep.subr.mxu0 0.0
    %225 = vmatpush1.msra.mxu0 %v175
    %226 = vmatprep.subr.mxu0 0.0
    %227 = vmatpush1.msra.mxu0 %v174
    %228 = vmatprep.subr.mxu0 0.0
    %229 = vmatpush2.msra.mxu0 0.0
    %230 = vmatprep.subr.mxu0 0.0
    %231 = vmatpush2.msra.mxu0 0.0
    %232 = vmatprep.subr.mxu0 0.0
    %233 = vmatpush2.msra.mxu0 0.0
    %234 = vmatprep.subr.mxu0 0.0
    %235 = vmatpush2.msra.mxu0 0.0
    %236 = vmatprep.subr.mxu0 0.0
    %237 = vmatpush2.msra.mxu0 0.0
    %238 = vmatprep.subr.mxu0 0.0
    %239 = vmatpush2.msra.mxu0 0.0
    %240 = vmatprep.subr.mxu0 0.0
    %241 = vmatpush2.msra.mxu0 0.0
    %242 = vmatprep.subr.mxu0 0.0
    %243 = vmatpush2.msra.mxu0 0.0
    %244 = vmatprep.subr.mxu0 0.0
    %245 = vmatpush2.msra.mxu0 0.0
    %246 = vmatprep.subr.mxu0 0.0
    %247 = vmatpush2.msra.mxu0 0.0
    %248 = vmatprep.subr.mxu0 0.0
    %249 = vmatpush2.msra.mxu0 0.0
    %250 = vmatprep.subr.mxu0 0.0
    %251 = vmatpush2.msra.mxu0 0.0
    %252 = vmatprep.subr.mxu0 0.0
    %253 = vmatpush2.msra.mxu0 0.0
    %254 = vmatprep.subr.mxu0 0.0
    %255 = vmatpush2.msra.mxu0 0.0
    %256 = vmatprep.subr.mxu0 0.0
    %257 = vmatpush2.msra.mxu0 0.0
    %258 = vmatprep.subr.mxu0 0.0
    %259 = vmatpush2.msra.mxu0 0.0
    %260 = vmatprep.mubr.f32.mxu0 0.0
    %261 = vmatmul.mubr.f32.gmra.mxu0 %v194
    %v262 = vpop.f32.mrf.mxu0
    %v263 = vadd.f32 %v191, %v262
    %v264 = vpop.f32.mrf.mxu0
    %265 = vdwg.mxu0
    %vm266 = vcmask 146432
    %267 = vst.msk [vmem:[#allocation2] sm:$0xff] %vm266, %v263
    // Predicated region
    $region38: #{tpu_custom_call.1} parent=1 // pred_check
      _
    $region39: #{tpu_custom_call.1} parent=1 // pred_check_branch
      %269 = sbr.rel (0) target = $region41
    $region40: #{tpu_custom_call.1} parent=1 // pred_region
      %s271 = ssub.s32 128, 128
      %272 = vsyncadd [#allocation3], %s271
      %s274 = sshll.u32 [#allocation2], 4
      %s275 = int_to_ptr.vmem [resolvable:$true] %s274
      %277 = dma.vmem_to_hbm [thread:$0]  %s275, 128, %s9, [#allocation3]
    $region41: #{tpu_custom_call.1} parent=1 // pred_fallthru
      _
    // Predicated region
    $region42: #{tpu_custom_call.1} parent=1 // pred_check
      _
    $region43: #{tpu_custom_call.1} parent=1 // pred_check_branch
      %279 = sbr.rel (0) target = $region45
    $region44: #{tpu_custom_call.1} parent=1 // pred_region
      %280 = dma.done [#allocation3], 128
    $region45: #{tpu_custom_call.1} parent=1 // pred_fallthru
      _
    %281 = vsyncpa [#allocation3], 1

</llo_original>
